<compile_context>
chip_gen: v6e
topology: v6e:2x2x1
jax: 0.10.0
libtpu: 0.0.40
codegen_flags: <defaults>
</compile_context>

<pallas_src>
import functools
import operator

import jax
import jax.numpy as jnp
from jax.experimental import pallas as pl
from jax.experimental.pallas import tpu as pltpu


def _copy_kernel(x_ref, o_ref):
    # Pure identity copy of the current tile.
    o_ref[...] = x_ref[...]


def _sublane_multiple(dtype):
    # Rows per fully-packed vreg: 8 for 32-bit, 16 for 16-bit, 32 for 8-bit.
    itemsize = jnp.dtype(dtype).itemsize
    return max(8, 32 // max(itemsize, 1))


def _choose_slab(total, sub_mult):
    """Lane-dense (rows, lanes) factorization of `total` elements.

    Returns the widest lane dim (multiple of 128) whose row count is also a
    multiple of the dtype's sublane packing (fully dense vregs, unmasked
    stores), or None if no such factorization exists.
    """
    for lanes in (1024, 512, 256, 128):
        if total % lanes == 0 and (total // lanes) % sub_mult == 0:
            return total // lanes, lanes
    return None


def _choose_block_rows(rows, lanes, itemsize, sub_mult):
    """Row-tile that (a) is a multiple of sub_mult, (b) divides rows exactly
    (no ragged tail / masked vst), (c) keeps the block <= ~4 MiB, and
    (d) leaves >= 2 grid steps when rows allow it (work for both v7x TCs)."""
    target_bytes = 4 * 1024 * 1024
    tr = (target_bytes // (lanes * itemsize)) // sub_mult * sub_mult
    tr = max(sub_mult, min(tr, rows))
    while rows % tr != 0:          # rows % sub_mult == 0, so tr=sub_mult always works
        tr -= sub_mult
    if rows // tr < 2 and rows >= 2 * sub_mult:
        cand = max(sub_mult, (rows // 2) // sub_mult * sub_mult)
        while rows % cand != 0:
            cand -= sub_mult
        tr = cand
    return tr


def flatten_pallas(x, keep_batch_dim=True, materialize=False):
    """Equivalent of Flatten.forward.

    x: array of shape (N, ...) (NCHW in the conv use case).
    keep_batch_dim=True  -> (N, prod(rest))
    keep_batch_dim=False -> (N * prod(rest),)

    materialize=False (default): metadata-only reshape, no kernel, no HBM
    traffic -- this matches torch's .view() semantics for a contiguous input.
    materialize=True: force the bytes through a tuned Pallas streaming copy.
    """
    n = x.shape[0]
    feat = functools.reduce(operator.mul, x.shape[1:], 1)
    total = n * feat
    out_shape = (n, feat) if keep_batch_dim else (total,)

    if not materialize:
        # Highest-value change from the perf review: a contiguous row-major
        # flatten needs no data movement at all.
        return jnp.reshape(x, out_shape)

    dtype = x.dtype
    itemsize = jnp.dtype(dtype).itemsize
    sub_mult = _sublane_multiple(dtype)
    slab = _choose_slab(total, sub_mult)

    if slab is None:
        # Non-128-aligned element count: a gridded lane-dense copy is not
        # expressible without padding, and a single giant unpipelined block
        # risks VMEM OOM on large inputs.  Fall back to the free reshape.
        # TODO(synk): pad-and-slice slab path for large non-128-aligned shapes.
        return jnp.reshape(x, out_shape)

    rows, lanes = slab
    tr = _choose_block_rows(rows, lanes, itemsize, sub_mult)
    grid = (rows // tr,)

    # Metadata-only reshape into the lane-dense slab (batch folded into rows;
    # the copy is batch-agnostic and preserves row-major element order).
    x_slab = jnp.reshape(x, (rows, lanes))

    out_slab = pl.pallas_call(
        _copy_kernel,
        out_shape=jax.ShapeDtypeStruct((rows, lanes), dtype),
        grid=grid,
        in_specs=[pl.BlockSpec((tr, lanes), lambda i: (i, 0))],
        out_specs=pl.BlockSpec((tr, lanes), lambda i: (i, 0)),
        compiler_params=pltpu.CompilerParams(
            dimension_semantics=("parallel",),
            vmem_limit_bytes=32 * 1024 * 1024,
        ),
    )(x_slab)
    return jnp.reshape(out_slab, out_shape)


if __name__ == "__main__":
    key = jax.random.PRNGKey(0)
    # Small NCHW input consistent with a conv-feature-map flatten.
    x = jax.random.normal(key, (2, 4, 16, 16), dtype=jnp.float32)

    # Default (fast) path: metadata-only reshape, no kernel.
    y_fast = jax.block_until_ready(flatten_pallas(x, keep_batch_dim=True))
    assert y_fast.shape == (2, 4 * 16 * 16)
    assert jnp.array_equal(y_fast, jnp.reshape(x, (2, -1)))

    # Materialized path: runs the tuned Pallas streaming copy once.
    y = jax.block_until_ready(flatten_pallas(x, keep_batch_dim=True, materialize=True))
    assert y.shape == (2, 4 * 16 * 16)
    assert jnp.array_equal(y, jnp.reshape(x, (2, -1)))

    # keep_batch_dim=False path (also through the kernel).
    y_flat = jax.block_until_ready(
        flatten_pallas(x, keep_batch_dim=False, materialize=True))
    assert y_flat.shape == (2 * 4 * 16 * 16,)
    assert jnp.array_equal(y_flat, jnp.reshape(x, (-1,)))

    print("KERNEL_OK")
</pallas_src>

<mosaic_0001>
module attributes {stable_mosaic.version = 11 : i64} {
  func.func @_copy_kernel(%arg0: i32, %arg1: memref<8x256xf32, #tpu.memory_space<vmem>>, %arg2: memref<8x256xf32, #tpu.memory_space<vmem>>) attributes {dimension_semantics = [#tpu.dimension_semantics<parallel>], iteration_bounds = array<i64: 1>, scalar_prefetch = 0 : i64, scratch_operands = 0 : i64, tpu.core_type = #tpu.core_type<tc>, window_params = [{transform_indices = @transform_0, window_bounds = array<i64: 8, 256>}, {transform_indices = @transform_1, window_bounds = array<i64: 8, 256>}]} {
    %c0 = arith.constant 0 : index
    %c0_0 = arith.constant 0 : index
    %0 = vector.load %arg1[%c0, %c0_0] : memref<8x256xf32, #tpu.memory_space<vmem>>, vector<8x256xf32>
    %c0_1 = arith.constant 0 : index
    %c0_2 = arith.constant 0 : index
    %1 = vector.load %arg2[%c0_1, %c0_2] : memref<8x256xf32, #tpu.memory_space<vmem>>, vector<8x256xf32>
    tpu.vector_store %arg2[%c0_1, %c0_2], %0 {strides = array<i32>} : memref<8x256xf32, #tpu.memory_space<vmem>>, vector<8x256xf32>,
    return
  }
  func.func @transform_0(%arg0: i32) -> (i32, i32) {
    %c0_i32 = arith.constant 0 : i32
    %c0_i32_0 = arith.constant 0 : i32
    return %arg0, %c0_i32 : i32, i32
  }
  func.func @transform_1(%arg0: i32) -> (i32, i32) {
    %c0_i32 = arith.constant 0 : i32
    %c0_i32_0 = arith.constant 0 : i32
    return %arg0, %c0_i32 : i32, i32
  }
}

</mosaic_0001>

<llo_original>
// kernel: tpu_custom_call.1
$region0: #{tpu_custom_call.1}
  #allocation0 [shape = 'u32[]', space=smem, size = 0x4, offset = 0x4, fixed_abs, tag = 'smem constant byte address 0x4 - core index']
  #allocation1 [shape = 'u32[144,128]{1,0:T(1,128)}', space=vmem, size = 0x12000, scoped, tag = 'internal scratch']
  %s0 = inlined_call_operand.hbm [shape: f32[8,256], index: 0, kind: input, shape index: {}]
  %s1 = inlined_call_operand.hbm [shape: f32[8,256], index: 1, kind: output, shape index: {}]
  %s2 = sld [smem:[#allocation0]]
  $region18: #{tpu_custom_call.1} parent=0
    _
  %s4 = ssub.s32 1, %s2
  %s5 = scalar_select 0, %s4, %s2
  $region1: #{tpu_custom_call.1} parent=0
    #allocation2 [shape = 'u8[8192]{0}', space=vmem, size = 0x2000, scoped, tag = 'input window, operand 0, single buffered']
    #allocation3 [shape = 's32[1]{0}', space=sflag, size = 0x4, scoped, tag = 'scoped memory for tpu_custom_call.1']
    #allocation4 [shape = 's32[1]{0}', space=sflag, size = 0x4, scoped, tag = 'scoped memory for tpu_custom_call.1']
    #allocation5 [shape = 'u8[8192]{0}', space=vmem, size = 0x2000, scoped, tag = 'output window, operand 0, single buffered']
    %6 = vsyncpa [#allocation3], 0
    %7 = vsyncpa [#allocation4], 0
    // Predicated region
    $region2: #{tpu_custom_call.1} parent=1 // pred_check
      _
    $region3: #{tpu_custom_call.1} parent=1 // pred_check_branch
      %9 = sbr.rel (0) target = $region5
    $region4: #{tpu_custom_call.1} parent=1 // pred_region
      %s11 = ssub.s32 256, 256
      %12 = vsyncadd [#allocation3], %s11
      %s14 = sshll.u32 [#allocation2], 4
      %s15 = int_to_ptr.vmem [resolvable:$true] %s14
      %17 = dma.hbm_to_vmem [thread:$0]  %s0, 256, %s15, [#allocation3]
    $region5: #{tpu_custom_call.1} parent=1 // pred_fallthru
      _
    // Predicated region
    $region6: #{tpu_custom_call.1} parent=1 // pred_check
      _
    $region7: #{tpu_custom_call.1} parent=1 // pred_check_branch
      %19 = sbr.rel (0) target = $region9
    $region8: #{tpu_custom_call.1} parent=1 // pred_region
      %20 = dma.done [#allocation3], 256
    $region9: #{tpu_custom_call.1} parent=1 // pred_fallthru
      _
    %v21 = vld [vmem:[#allocation2] sm:$0xff]
    %v22 = vld [vmem:[#allocation2 + $0x8] sm:$0xff]
    %23 = vst [vmem:[#allocation5] sm:$0xff] %v21
    %24 = vst [vmem:[#allocation5 + $0x8] sm:$0xff] %v22
    // Predicated region
    $region10: #{tpu_custom_call.1} parent=1 // pred_check
      _
    $region11: #{tpu_custom_call.1} parent=1 // pred_check_branch
      %26 = sbr.rel (0) target = $region13
    $region12: #{tpu_custom_call.1} parent=1 // pred_region
      %s28 = ssub.s32 256, 256
      %29 = vsyncadd [#allocation4], %s28
      %s31 = sshll.u32 [#allocation5], 4
      %s32 = int_to_ptr.vmem [resolvable:$true] %s31
      %34 = dma.vmem_to_hbm [thread:$0]  %s32, 256, %s1, [#allocation4]
    $region13: #{tpu_custom_call.1} parent=1 // pred_fallthru
      _
    // Predicated region
    $region14: #{tpu_custom_call.1} parent=1 // pred_check
      _
    $region15: #{tpu_custom_call.1} parent=1 // pred_check_branch
      %36 = sbr.rel (0) target = $region17
    $region16: #{tpu_custom_call.1} parent=1 // pred_region
      %37 = dma.done [#allocation4], 256
    $region17: #{tpu_custom_call.1} parent=1 // pred_fallthru
      _
    %38 = vsyncpa [#allocation3], 1
    %39 = vsyncpa [#allocation4], 1

</llo_original>
